<compile_context>
chip_gen: v6e
topology: v6e:2x2x1
jax: 0.10.0
libtpu: 0.0.40
codegen_flags: <defaults>
</compile_context>

<pallas_src>
import functools

import jax
import jax.numpy as jnp
from jax import lax
from jax.experimental import pallas as pl
from jax.experimental.pallas import tpu as pltpu


def _round_up(x, m):
    return ((x + m - 1) // m) * m


def _apply_act(x, name):
    # Elementwise nonlinearity, kept in f32 on the VPU/EUP (v5e has no bf16 VPU).
    if name is None:
        return x
    if name == "relu":
        return jnp.maximum(x, 0.0)
    if name == "sigmoid":
        return jax.nn.sigmoid(x)
    if name == "leaky_relu":
        return jnp.where(x >= 0, x, 0.01 * x)
    if name == "sine":
        return jnp.sin(x)
    if name == "tanh":
        return jnp.tanh(x)
    raise ValueError(f"unknown activation {name}")


# --------------------------------------------------------------------------------------
# Kernels
# --------------------------------------------------------------------------------------
def _resident_kernel(*refs, act, n_mid):
    """Whole network for one M tile; all weights VMEM-resident. grid = (M_tiles,)."""
    if n_mid > 0:
        x_ref, w_first_ref, w_mid_ref, w_last_ref, o_ref = refs
    else:
        x_ref, w_first_ref, w_last_ref, o_ref = refs
        w_mid_ref = None

    # First Linear: bf16 inputs on the MXU, f32 accumulation.
    h = jnp.dot(
        x_ref[...].astype(jnp.bfloat16),
        w_first_ref[...],
        preferred_element_type=jnp.float32,
    )

    if n_mid > 0:
        # Middle layers: act (f32, VPU/EUP) then Linear.  Static trip count and
        # unroll=True => fully unrolled, the LLO scheduler sees every matmul.
        def body(i, h):
            hb = _apply_act(h, act).astype(jnp.bfloat16)
            return jnp.dot(hb, w_mid_ref[i], preferred_element_type=jnp.float32)

        h = lax.fori_loop(0, n_mid, body, h, unroll=True)

    # Last layer into the lane-dense (zero-padded to 128*k) output block.
    hb = _apply_act(h, act).astype(jnp.bfloat16)
    o_ref[...] = jnp.dot(hb, w_last_ref[...], preferred_element_type=jnp.float32)


def _streamed_kernel(x_ref, w_first_ref, w_mid_ref, w_last_ref, o_ref, act_ref, *, act):
    """Fallback for very large L*width^2: grid = (M_tiles, n_mid); the layer axis is
    the inner 'arbitrary' axis, so Pallas double-buffers layer l+1's weight DMA behind
    layer l's matmul while the running activation persists in act_ref."""
    l = pl.program_id(1)
    last_l = pl.num_programs(1) - 1

    @pl.when(l == 0)
    def _():
        act_ref[...] = jnp.dot(
            x_ref[...].astype(jnp.bfloat16),
            w_first_ref[...],
            preferred_element_type=jnp.float32,
        )

    h = _apply_act(act_ref[...], act).astype(jnp.bfloat16)
    act_ref[...] = jnp.dot(h, w_mid_ref[0], preferred_element_type=jnp.float32)

    @pl.when(l == last_l)
    def _():
        h2 = _apply_act(act_ref[...], act).astype(jnp.bfloat16)
        o_ref[...] = jnp.dot(h2, w_last_ref[...], preferred_element_type=jnp.float32)


# --------------------------------------------------------------------------------------
# Wrapper
# --------------------------------------------------------------------------------------
def prepare_params(params):
    """ONE-TIME weight prep (hoisted out of the per-call path):
       bf16 cast, stack middle layers to [L,width,width], lane-pad the last layer."""
    width = params["first"].shape[1]
    num_classes = params["last"].shape[1]
    n_pad = _round_up(max(num_classes, 128), 128)
    w_first = params["first"].astype(jnp.bfloat16)
    w_last = (
        jnp.zeros((width, n_pad), jnp.bfloat16)
        .at[:, :num_classes]
        .set(params["last"].astype(jnp.bfloat16))
    )
    middle = params.get("middle") or []
    w_mid = jnp.stack(middle).astype(jnp.bfloat16) if len(middle) else None
    return {"first": w_first, "middle": w_mid, "last": w_last, "num_classes": num_classes}


def _choose_tm(M):
    # tm multiple of 8 (sublane), capped at 512; for M>=16 force >=2 tiles so both
    # v7x TensorCores get work on the 'parallel' M axis.
    if M >= 1024:
        return 512
    if M >= 16:
        return max(8, _round_up((M + 1) // 2, 8))
    return 8


def net_forward(x, prepped, act_name="relu", *, vmem_budget_bytes=48 * 1024 * 1024):
    """Pallas implementation of Net.forward (single fused pallas_call)."""
    M, dim = x.shape
    w_first = prepped["first"]
    w_mid = prepped["middle"]
    w_last = prepped["last"]
    num_classes = prepped["num_classes"]
    width = w_first.shape[1]
    n_pad = w_last.shape[1]
    n_mid = 0 if w_mid is None else w_mid.shape[0]

    tm = _choose_tm(M)
    m_pad = _round_up(M, tm)
    if m_pad != M:
        # Bounded tm + padded last tile instead of one giant tm=M tile.
        x = jnp.zeros((m_pad, dim), x.dtype).at[:M, :].set(x)
    m_tiles = m_pad // tm

    # ---- VMEM budgeting (conservative for v7x's 64 MiB) --------------------------------
    weight_bytes = 2 * (dim * width + n_mid * width * width + width * n_pad)  # bf16
    io_bytes = 2 * tm * dim * x.dtype.itemsize + 2 * tm * n_pad * 4  # dbl-buffered x / out
    act_bytes = tm * width * 4
    # Default pipelining double-buffers each input block, so count weights twice.
    resident_vmem = 2 * weight_bytes + io_bytes + act_bytes
    use_resident = (n_mid == 0) or (resident_vmem <= vmem_budget_bytes)

    # Advisory cost hint for XLA scheduling.
    flops = 2 * m_pad * (dim * width + n_mid * width * width + width * num_classes)
    trans = 0 if act_name in ("relu", "leaky_relu", None) else (n_mid + 1) * m_pad * width
    bytes_accessed = (
        x.size * x.dtype.itemsize
        + weight_bytes * (1 if use_resident else m_tiles)
        + m_pad * n_pad * 4
    )
    cost = pl.CostEstimate(flops=flops, transcendentals=trans, bytes_accessed=bytes_accessed)

    if use_resident:
        # Whole weight stack VMEM-resident; grid is only the (parallel) M axis.
        in_specs = [
            pl.BlockSpec((tm, dim), lambda mi: (mi, 0)),
            pl.BlockSpec((dim, width), lambda mi: (0, 0)),
        ]
        inputs = [x, w_first]
        if n_mid > 0:
            in_specs.append(pl.BlockSpec((n_mid, width, width), lambda mi: (0, 0, 0)))
            inputs.append(w_mid)
        in_specs.append(pl.BlockSpec((width, n_pad), lambda mi: (0, 0)))
        inputs.append(w_last)

        kernel = functools.partial(_resident_kernel, act=act_name, n_mid=n_mid)
        grid = (m_tiles,)
        out_specs = pl.BlockSpec((tm, n_pad), lambda mi: (mi, 0))
        scratch_shapes = []
        dim_sem = ("parallel",)
        vmem_need = resident_vmem
    else:
        # Streamed fallback: middle weights flow along the inner 'arbitrary' layer axis.
        # TODO(synk): for width >= ~4096 on v7x (64 MiB VMEM) the (width,width) block
        # itself needs K-tiling; not implemented here.
        in_specs = [
            pl.BlockSpec((tm, dim), lambda mi, l: (mi, 0)),
            pl.BlockSpec((dim, width), lambda mi, l: (0, 0)),
            pl.BlockSpec((1, width, width), lambda mi, l: (l, 0, 0)),
            pl.BlockSpec((width, n_pad), lambda mi, l: (0, 0)),
        ]
        inputs = [x, w_first, w_mid, w_last]
        kernel = functools.partial(_streamed_kernel, act=act_name)
        grid = (m_tiles, n_mid)
        out_specs = pl.BlockSpec((tm, n_pad), lambda mi, l: (mi, 0))
        scratch_shapes = [pltpu.VMEM((tm, width), jnp.float32)]
        dim_sem = ("parallel", "arbitrary")
        vmem_need = (
            2 * 2 * dim * width + 2 * 2 * width * width + 2 * 2 * width * n_pad
            + io_bytes + act_bytes
        )

    # Explicit scoped-VMEM limit (>= default 32 MiB, <= v7x physical 64 MiB).
    vmem_limit = int(min(64 * 1024 * 1024, max(32 * 1024 * 1024, 2 * vmem_need)))

    out = pl.pallas_call(
        kernel,
        out_shape=jax.ShapeDtypeStruct((m_pad, n_pad), jnp.float32),
        grid_spec=pltpu.PrefetchScalarGridSpec(
            num_scalar_prefetch=0,
            grid=grid,
            in_specs=in_specs,
            out_specs=out_specs,
            scratch_shapes=scratch_shapes,
        ),
        compiler_params=pltpu.CompilerParams(
            dimension_semantics=dim_sem,
            vmem_limit_bytes=vmem_limit,
        ),
        cost_estimate=cost,
    )(*inputs)
    return out[:M, :num_classes]


# --------------------------------------------------------------------------------------
# Parameter init (matches torch nn.Linear(bias=False) default init; stored as [in,out])
# --------------------------------------------------------------------------------------
def init_net_params(key, dim, depth, width, num_classes):
    params = {}
    keys = jax.random.split(key, depth + 1)

    def kaiming_t(k, fan_in, fan_out):
        bound = 1.0 / jnp.sqrt(fan_in)
        w = jax.random.uniform(k, (fan_out, fan_in), jnp.float32, -bound, bound)
        return w.T  # store as [in, out]

    params["first"] = kaiming_t(keys[0], dim, width)
    n_mid = depth - 1 if depth > 1 else 0
    params["middle"] = [kaiming_t(keys[1 + i], width, width) for i in range(n_mid)]
    params["last"] = kaiming_t(keys[depth], width, num_classes)
    return params


if __name__ == "__main__":
    batch = 8
    dim = 32
    width = 128
    num_classes = 2
    act_name = "relu"
    key = jax.random.PRNGKey(0)
    kx, kp = jax.random.split(key)
    x = jax.random.normal(kx, (batch, dim), dtype=jnp.float32)

    def q(w):  # mirror the kernel's bf16 weight quantization in the reference
        return w.astype(jnp.bfloat16).astype(jnp.float32)

    # ---- depth = 3 (first + 2 middle + last), resident path -----------------------------
    depth = 3
    params = init_net_params(kp, dim, depth, width, num_classes)
    prepped = prepare_params(params)          # one-time weight prep, reused per call
    out = jax.block_until_ready(net_forward(x, prepped, act_name))
    assert out.shape == (batch, num_classes), out.shape

    ref = x @ q(params["first"])
    for w_mid in params["middle"]:
        ref = jnp.maximum(ref, 0.0) @ q(w_mid)
    ref = jnp.maximum(ref, 0.0) @ q(params["last"])
    assert jnp.allclose(out, ref, atol=2e-2, rtol=2e-2), jnp.max(jnp.abs(out - ref))

    # ---- depth = 1 (first -> act -> last), no middle layers ------------------------------
    params1 = init_net_params(kp, dim, 1, width, num_classes)
    prepped1 = prepare_params(params1)
    out1 = jax.block_until_ready(net_forward(x, prepped1, act_name))
    ref1 = jnp.maximum(x @ q(params1["first"]), 0.0) @ q(params1["last"])
    assert out1.shape == (batch, num_classes)
    assert jnp.allclose(out1, ref1, atol=2e-2, rtol=2e-2), jnp.max(jnp.abs(out1 - ref1))

    print("KERNEL_OK")
</pallas_src>

<mosaic_0001>
module attributes {stable_mosaic.version = 11 : i64} {
  func.func @_resident_kernel(%arg0: i32, %arg1: memref<8x32xf32, #tpu.memory_space<vmem>>, %arg2: memref<32x128xbf16, #tpu.memory_space<vmem>>, %arg3: memref<2x128x128xbf16, #tpu.memory_space<vmem>>, %arg4: memref<128x128xbf16, #tpu.memory_space<vmem>>, %arg5: memref<8x128xf32, #tpu.memory_space<vmem>>) attributes {dimension_semantics = [#tpu.dimension_semantics<parallel>], iteration_bounds = array<i64: 1>, scalar_prefetch = 0 : i64, scratch_operands = 0 : i64, tpu.core_type = #tpu.core_type<tc>, window_params = [{transform_indices = @transform_0, window_bounds = array<i64: 8, 32>}, {pipeline_mode = #tpu.pipeline_mode<synchronous>, transform_indices = @transform_1, window_bounds = array<i64: 32, 128>}, {pipeline_mode = #tpu.pipeline_mode<synchronous>, transform_indices = @transform_2, window_bounds = array<i64: 2, 128, 128>}, {pipeline_mode = #tpu.pipeline_mode<synchronous>, transform_indices = @transform_3, window_bounds = array<i64: 128, 128>}, {transform_indices = @transform_4, window_bounds = array<i64: 8, 128>}]} {
    %c0 = arith.constant 0 : index
    %c0_0 = arith.constant 0 : index
    %0 = vector.load %arg1[%c0, %c0_0] : memref<8x32xf32, #tpu.memory_space<vmem>>, vector<8x32xf32>
    %1 = arith.truncf %0 : vector<8x32xf32> to vector<8x32xbf16>
    %c0_1 = arith.constant 0 : index
    %c0_2 = arith.constant 0 : index
    %2 = vector.load %arg2[%c0_1, %c0_2] : memref<32x128xbf16, #tpu.memory_space<vmem>>, vector<32x128xbf16>
    %cst = arith.constant dense<0.000000e+00> : vector<8x128xf32>
    %3 = tpu.matmul %1, %2, %cst {dimension_numbers = #tpu.dot_dimension_numbers<[1], [0], [0], [1], [0, 0, 1, 1], [], []>} : vector<8x32xbf16>, vector<32x128xbf16>, vector<8x128xf32> -> vector<8x128xf32>
    %c0_i32 = arith.constant 0 : i32
    %cst_3 = arith.constant 0.000000e+00 : f32
    %4 = vector.broadcast %cst_3 : f32 to vector<8x128xf32>
    %5 = arith.maximumf %3, %4 : vector<8x128xf32>
    %6 = arith.truncf %5 : vector<8x128xf32> to vector<8x128xbf16>
    %7 = arith.index_cast %c0_i32 : i32 to index
    %c0_4 = arith.constant 0 : index
    %c0_5 = arith.constant 0 : index
    %8 = vector.load %arg3[%7, %c0_4, %c0_5] : memref<2x128x128xbf16, #tpu.memory_space<vmem>>, vector<1x128x128xbf16>
    %9 = vector.shape_cast %8 : vector<1x128x128xbf16> to vector<128x128xbf16>
    %cst_6 = arith.constant dense<0.000000e+00> : vector<8x128xf32>
    %10 = tpu.matmul %6, %9, %cst_6 {dimension_numbers = #tpu.dot_dimension_numbers<[1], [0], [0], [1], [0, 0, 1, 1], [], []>} : vector<8x128xbf16>, vector<128x128xbf16>, vector<8x128xf32> -> vector<8x128xf32>
    %c1_i32 = arith.constant 1 : i32
    %cst_7 = arith.constant 0.000000e+00 : f32
    %11 = vector.broadcast %cst_7 : f32 to vector<8x128xf32>
    %12 = arith.maximumf %10, %11 : vector<8x128xf32>
    %13 = arith.truncf %12 : vector<8x128xf32> to vector<8x128xbf16>
    %14 = arith.index_cast %c1_i32 : i32 to index
    %c0_8 = arith.constant 0 : index
    %c0_9 = arith.constant 0 : index
    %15 = vector.load %arg3[%14, %c0_8, %c0_9] : memref<2x128x128xbf16, #tpu.memory_space<vmem>>, vector<1x128x128xbf16>
    %16 = vector.shape_cast %15 : vector<1x128x128xbf16> to vector<128x128xbf16>
    %cst_10 = arith.constant dense<0.000000e+00> : vector<8x128xf32>
    %17 = tpu.matmul %13, %16, %cst_10 {dimension_numbers = #tpu.dot_dimension_numbers<[1], [0], [0], [1], [0, 0, 1, 1], [], []>} : vector<8x128xbf16>, vector<128x128xbf16>, vector<8x128xf32> -> vector<8x128xf32>
    %c2_i32 = arith.constant 2 : i32
    %cst_11 = arith.constant 0.000000e+00 : f32
    %18 = vector.broadcast %cst_11 : f32 to vector<8x128xf32>
    %19 = arith.maximumf %17, %18 : vector<8x128xf32>
    %20 = arith.truncf %19 : vector<8x128xf32> to vector<8x128xbf16>
    %c0_12 = arith.constant 0 : index
    %c0_13 = arith.constant 0 : index
    %21 = vector.load %arg4[%c0_12, %c0_13] : memref<128x128xbf16, #tpu.memory_space<vmem>>, vector<128x128xbf16>
    %cst_14 = arith.constant dense<0.000000e+00> : vector<8x128xf32>
    %22 = tpu.matmul %20, %21, %cst_14 {dimension_numbers = #tpu.dot_dimension_numbers<[1], [0], [0], [1], [0, 0, 1, 1], [], []>} : vector<8x128xbf16>, vector<128x128xbf16>, vector<8x128xf32> -> vector<8x128xf32>
    %c0_15 = arith.constant 0 : index
    %c0_16 = arith.constant 0 : index
    %23 = vector.load %arg5[%c0_15, %c0_16] : memref<8x128xf32, #tpu.memory_space<vmem>>, vector<8x128xf32>
    tpu.vector_store %arg5[%c0_15, %c0_16], %22 {strides = array<i32>} : memref<8x128xf32, #tpu.memory_space<vmem>>, vector<8x128xf32>,
    return
  }
  func.func @transform_0(%arg0: i32) -> (i32, i32) {
    %c0_i32 = arith.constant 0 : i32
    %c0_i32_0 = arith.constant 0 : i32
    return %arg0, %c0_i32 : i32, i32
  }
  func.func @transform_1(%arg0: i32) -> (i32, i32) {
    %c0_i32 = arith.constant 0 : i32
    %c0_i32_0 = arith.constant 0 : i32
    %c0_i32_1 = arith.constant 0 : i32
    return %c0_i32, %c0_i32_0 : i32, i32
  }
  func.func @transform_2(%arg0: i32) -> (i32, i32, i32) {
    %c0_i32 = arith.constant 0 : i32
    %c0_i32_0 = arith.constant 0 : i32
    %c0_i32_1 = arith.constant 0 : i32
    %c0_i32_2 = arith.constant 0 : i32
    return %c0_i32, %c0_i32_0, %c0_i32_1 : i32, i32, i32
  }
  func.func @transform_3(%arg0: i32) -> (i32, i32) {
    %c0_i32 = arith.constant 0 : i32
    %c0_i32_0 = arith.constant 0 : i32
    %c0_i32_1 = arith.constant 0 : i32
    return %c0_i32, %c0_i32_0 : i32, i32
  }
  func.func @transform_4(%arg0: i32) -> (i32, i32) {
    %c0_i32 = arith.constant 0 : i32
    %c0_i32_0 = arith.constant 0 : i32
    return %arg0, %c0_i32 : i32, i32
  }
}

</mosaic_0001>

<llo_original>
// kernel: tpu_custom_call.1
$region0: #{tpu_custom_call.1}
  #allocation0 [shape = 'u32[]', space=smem, size = 0x4, offset = 0x4, fixed_abs, tag = 'smem constant byte address 0x4 - core index']
  #allocation1 [shape = 'u32[144,128]{1,0:T(1,128)}', space=vmem, size = 0x12000, scoped, tag = 'internal scratch']
  %s0 = inlined_call_operand.hbm [shape: f32[8,32], index: 0, kind: input, shape index: {}]
  %s1 = inlined_call_operand.hbm [shape: bf16[32,128], index: 1, kind: input, shape index: {}]
  %s2 = inlined_call_operand.hbm [shape: bf16[2,128,128], index: 2, kind: input, shape index: {}]
  %s3 = inlined_call_operand.hbm [shape: bf16[128,128], index: 3, kind: input, shape index: {}]
  %s4 = inlined_call_operand.hbm [shape: f32[8,128], index: 4, kind: output, shape index: {}]
  %s5 = sld [smem:[#allocation0]]
  $region42: #{tpu_custom_call.1} parent=0
    _
  %s7 = ssub.s32 1, %s5
  %s8 = scalar_select 0, %s7, %s5
  $region1: #{tpu_custom_call.1} parent=0
    #allocation2 [shape = 'u8[4096]{0}', space=vmem, size = 0x1000, scoped, tag = 'input window, operand 0, single buffered']
    #allocation3 [shape = 's32[1]{0}', space=sflag, size = 0x4, scoped, tag = 'scoped memory for tpu_custom_call.1']
    #allocation4 [shape = 's32[1]{0}', space=sflag, size = 0x4, scoped, tag = 'scoped memory for tpu_custom_call.1']
    #allocation5 [shape = 'u8[8192]{0}', space=vmem, size = 0x2000, scoped, tag = 'input window, operand 1, single buffered']
    #allocation6 [shape = 's32[1]{0}', space=sflag, size = 0x4, scoped, tag = 'scoped memory for tpu_custom_call.1']
    #allocation7 [shape = 'u8[65536]{0}', space=vmem, size = 0x10000, scoped, tag = 'input window, operand 2, single buffered']
    #allocation8 [shape = 'u8[32768]{0}', space=vmem, size = 0x8000, scoped, tag = 'input window, operand 3, single buffered']
    #allocation9 [shape = 's32[1]{0}', space=sflag, size = 0x4, scoped, tag = 'scoped memory for tpu_custom_call.1']
    #allocation10 [shape = 'u8[4096]{0}', space=vmem, size = 0x1000, scoped, tag = 'output window, operand 0, single buffered']
    %9 = vsyncpa [#allocation3], 0
    %10 = vsyncpa [#allocation6], 0
    %11 = vsyncpa [#allocation9], 0
    %12 = vsyncpa [#allocation4], 0
    // Predicated region
    $region2: #{tpu_custom_call.1} parent=1 // pred_check
      _
    $region3: #{tpu_custom_call.1} parent=1 // pred_check_branch
      %14 = sbr.rel (0) target = $region5
    $region4: #{tpu_custom_call.1} parent=1 // pred_region
      %s16 = ssub.s32 128, 128
      %17 = vsyncadd [#allocation3], %s16
      %s19 = sshll.u32 [#allocation2], 4
      %s20 = int_to_ptr.vmem [resolvable:$true] %s19
      %22 = dma.hbm_to_vmem [thread:$0]  %s0, 128, %s20, [#allocation3]
    $region5: #{tpu_custom_call.1} parent=1 // pred_fallthru
      _
    // Predicated region
    $region6: #{tpu_custom_call.1} parent=1 // pred_check
      _
    $region7: #{tpu_custom_call.1} parent=1 // pred_check_branch
      %24 = sbr.rel (0) target = $region9
    $region8: #{tpu_custom_call.1} parent=1 // pred_region
      %s26 = ssub.s32 256, 256
      %27 = vsyncadd [#allocation6], %s26
      %s28 = sshll.u32 [#allocation5], 4
      %s29 = int_to_ptr.vmem [resolvable:$true] %s28
      %34 = dma.hbm_to_vmem [thread:$0]  %s1, 256, %s29, [#allocation6], 64, 64, 4
    $region9: #{tpu_custom_call.1} parent=1 // pred_fallthru
      _
    // Predicated region
    $region10: #{tpu_custom_call.1} parent=1 // pred_check
      _
    $region11: #{tpu_custom_call.1} parent=1 // pred_check_branch
      %36 = sbr.rel (0) target = $region13
    $region12: #{tpu_custom_call.1} parent=1 // pred_region
      %s38 = ssub.s32 2048, 2048
      %39 = vsyncadd [#allocation6], %s38
      %s40 = sshll.u32 [#allocation7], 4
      %s41 = int_to_ptr.vmem [resolvable:$true] %s40
      %46 = dma.hbm_to_vmem [thread:$0]  %s2, 2048, %s41, [#allocation6], 64, 64, 4
    $region13: #{tpu_custom_call.1} parent=1 // pred_fallthru
      _
    // Predicated region
    $region14: #{tpu_custom_call.1} parent=1 // pred_check
      _
    $region15: #{tpu_custom_call.1} parent=1 // pred_check_branch
      %48 = sbr.rel (0) target = $region17
    $region16: #{tpu_custom_call.1} parent=1 // pred_region
      %s50 = ssub.s32 1024, 1024
      %51 = vsyncadd [#allocation9], %s50
      %s52 = sshll.u32 [#allocation8], 4
      %s53 = int_to_ptr.vmem [resolvable:$true] %s52
      %58 = dma.hbm_to_vmem [thread:$0]  %s3, 1024, %s53, [#allocation9], 64, 64, 4
    $region17: #{tpu_custom_call.1} parent=1 // pred_fallthru
      _
    // Predicated region
    $region18: #{tpu_custom_call.1} parent=1 // pred_check
      _
    $region19: #{tpu_custom_call.1} parent=1 // pred_check_branch
      %60 = sbr.rel (0) target = $region21
    $region20: #{tpu_custom_call.1} parent=1 // pred_region
      %61 = dma.done [#allocation3], 128
    $region21: #{tpu_custom_call.1} parent=1 // pred_fallthru
      _
    // Predicated region
    $region22: #{tpu_custom_call.1} parent=1 // pred_check
      _
    $region23: #{tpu_custom_call.1} parent=1 // pred_check_branch
      %63 = sbr.rel (0) target = $region25
    $region24: #{tpu_custom_call.1} parent=1 // pred_region
      %64 = dma.done [#allocation6], 256
    $region25: #{tpu_custom_call.1} parent=1 // pred_fallthru
      _
    // Predicated region
    $region26: #{tpu_custom_call.1} parent=1 // pred_check
      _
    $region27: #{tpu_custom_call.1} parent=1 // pred_check_branch
      %66 = sbr.rel (0) target = $region29
    $region28: #{tpu_custom_call.1} parent=1 // pred_region
      %67 = dma.done [#allocation6], 2048
    $region29: #{tpu_custom_call.1} parent=1 // pred_fallthru
      _
    // Predicated region
    $region30: #{tpu_custom_call.1} parent=1 // pred_check
      _
    $region31: #{tpu_custom_call.1} parent=1 // pred_check_branch
      %69 = sbr.rel (0) target = $region33
    $region32: #{tpu_custom_call.1} parent=1 // pred_region
      %70 = dma.done [#allocation9], 1024
    $region33: #{tpu_custom_call.1} parent=1 // pred_fallthru
      _
    %v72 = vld [vmem:[#allocation2] sm:$0xff]
    %v73 = vpack.c.bf16 %v72, %v72
    %v74 = vld [vmem:[#allocation5] sm:$0xf]
    %v75 = vld [vmem:[#allocation5 + $0x4] sm:$0xf]
    %v76 = vld [vmem:[#allocation5 + $0x8] sm:$0xf]
    %v77 = vld [vmem:[#allocation5 + $0xc] sm:$0xf]
    %v82 = vunpack.c.l.b16 %v74
    %v83 = vunpack.c.l.b16 %v75
    %v84 = vunpack.c.l.b16 %v76
    %v85 = vunpack.c.l.b16 %v77
    %v86 = vpack.c.b16 %v83, %v82
    %v87 = vpack.c.b16 %v85, %v84
    %vm90 = vcmask 261120
    %v92 = vsel %vm90, %v73, 0
    %94 = vmatprep.subr.bf16.mxu0 0
    %95 = vmatpush1.bf16.msra.mxu0 0
    %96 = vmatprep.subr.bf16.mxu0 0
    %97 = vmatpush1.bf16.msra.mxu0 0
    %98 = vmatprep.subr.bf16.mxu0 0
    %99 = vmatpush1.bf16.msra.mxu0 0
    %100 = vmatprep.subr.bf16.mxu0 0
    %101 = vmatpush1.bf16.msra.mxu0 0
    %102 = vmatprep.subr.bf16.mxu0 0
    %103 = vmatpush1.bf16.msra.mxu0 0
    %104 = vmatprep.subr.bf16.mxu0 0
    %105 = vmatpush1.bf16.msra.mxu0 0
    %106 = vmatprep.subr.bf16.mxu0 0
    %107 = vmatpush1.bf16.msra.mxu0 %v87
    %108 = vmatprep.subr.bf16.mxu0 0
    %109 = vmatpush1.bf16.msra.mxu0 %v86
    %110 = vmatprep.subr.bf16.mxu0 0
    %111 = vmatpush2.bf16.msra.mxu0 0
    %112 = vmatprep.subr.bf16.mxu0 0
    %113 = vmatpush2.bf16.msra.mxu0 0
    %114 = vmatprep.subr.bf16.mxu0 0
    %115 = vmatpush2.bf16.msra.mxu0 0
    %116 = vmatprep.subr.bf16.mxu0 0
    %117 = vmatpush2.bf16.msra.mxu0 0
    %118 = vmatprep.subr.bf16.mxu0 0
    %119 = vmatpush2.bf16.msra.mxu0 0
    %120 = vmatprep.subr.bf16.mxu0 0
    %121 = vmatpush2.bf16.msra.mxu0 0
    %122 = vmatprep.subr.bf16.mxu0 0
    %123 = vmatpush2.bf16.msra.mxu0 0
    %124 = vmatprep.subr.bf16.mxu0 0
    %125 = vmatpush2.bf16.msra.mxu0 0
    %126 = vmatprep.mubr.bf16.mxu0 0
    %127 = vmatmul.mubr.bf16.gmra.mxu0 %v92
    %v128 = vpop.f32.mrf.mxu0
    %v129 = vadd.f32 0.0, %v128
    %v130 = vpop.f32.mrf.mxu0
    %v131 = vpop.f32.mrf.mxu0
    %v132 = vpop.f32.mrf.mxu0
    %133 = vdwg.mxu0
    %v134 = vmax.f32 %v129, 0.0
    %v135 = vpack.c.bf16 %v134, %v134
    %v136 = vld [vmem:[#allocation7] sm:$0xf]
    %v137 = vld [vmem:[#allocation7 + $0x4] sm:$0xf]
    %v138 = vld [vmem:[#allocation7 + $0x8] sm:$0xf]
    %v139 = vld [vmem:[#allocation7 + $0xc] sm:$0xf]
    %v140 = vld [vmem:[#allocation7 + $0x10] sm:$0xf]
    %v141 = vld [vmem:[#allocation7 + $0x14] sm:$0xf]
    %v142 = vld [vmem:[#allocation7 + $0x18] sm:$0xf]
    %v143 = vld [vmem:[#allocation7 + $0x1c] sm:$0xf]
    %v144 = vld [vmem:[#allocation7 + $0x20] sm:$0xf]
    %v145 = vld [vmem:[#allocation7 + $0x24] sm:$0xf]
    %v146 = vld [vmem:[#allocation7 + $0x28] sm:$0xf]
    %v147 = vld [vmem:[#allocation7 + $0x2c] sm:$0xf]
    %v148 = vld [vmem:[#allocation7 + $0x30] sm:$0xf]
    %v149 = vld [vmem:[#allocation7 + $0x34] sm:$0xf]
    %v150 = vld [vmem:[#allocation7 + $0x38] sm:$0xf]
    %v151 = vld [vmem:[#allocation7 + $0x3c] sm:$0xf]
    %v168 = vunpack.c.l.b16 %v136
    %v169 = vunpack.c.l.b16 %v137
    %v170 = vunpack.c.l.b16 %v138
    %v171 = vunpack.c.l.b16 %v139
    %v172 = vunpack.c.l.b16 %v140
    %v173 = vunpack.c.l.b16 %v141
    %v174 = vunpack.c.l.b16 %v142
    %v175 = vunpack.c.l.b16 %v143
    %v176 = vunpack.c.l.b16 %v144
    %v177 = vunpack.c.l.b16 %v145
    %v178 = vunpack.c.l.b16 %v146
    %v179 = vunpack.c.l.b16 %v147
    %v180 = vunpack.c.l.b16 %v148
    %v181 = vunpack.c.l.b16 %v149
    %v182 = vunpack.c.l.b16 %v150
    %v183 = vunpack.c.l.b16 %v151
    %v184 = vpack.c.b16 %v169, %v168
    %v185 = vpack.c.b16 %v171, %v170
    %v186 = vpack.c.b16 %v173, %v172
    %v187 = vpack.c.b16 %v175, %v174
    %v188 = vpack.c.b16 %v177, %v176
    %v189 = vpack.c.b16 %v179, %v178
    %v190 = vpack.c.b16 %v181, %v180
    %v191 = vpack.c.b16 %v183, %v182
    %200 = vmatprep.subr.bf16.mxu0 0
    %201 = vmatpush1.bf16.msra.mxu0 %v191
    %202 = vmatprep.subr.bf16.mxu0 0
    %203 = vmatpush1.bf16.msra.mxu0 %v190
    %204 = vmatprep.subr.bf16.mxu0 0
    %205 = vmatpush1.bf16.msra.mxu0 %v189
    %206 = vmatprep.subr.bf16.mxu0 0
    %207 = vmatpush1.bf16.msra.mxu0 %v188
    %208 = vmatprep.subr.bf16.mxu0 0
    %209 = vmatpush1.bf16.msra.mxu0 %v187
    %210 = vmatprep.subr.bf16.mxu0 0
    %211 = vmatpush1.bf16.msra.mxu0 %v186
    %212 = vmatprep.subr.bf16.mxu0 0
    %213 = vmatpush1.bf16.msra.mxu0 %v185
    %214 = vmatprep.subr.bf16.mxu0 0
    %215 = vmatpush1.bf16.msra.mxu0 %v184
    %216 = vmatprep.subr.bf16.mxu0 0
    %217 = vmatpush2.bf16.msra.mxu0 0
    %218 = vmatprep.subr.bf16.mxu0 0
    %219 = vmatpush2.bf16.msra.mxu0 0
    %220 = vmatprep.subr.bf16.mxu0 0
    %221 = vmatpush2.bf16.msra.mxu0 0
    %222 = vmatprep.subr.bf16.mxu0 0
    %223 = vmatpush2.bf16.msra.mxu0 0
    %224 = vmatprep.subr.bf16.mxu0 0
    %225 = vmatpush2.bf16.msra.mxu0 0
    %226 = vmatprep.subr.bf16.mxu0 0
    %227 = vmatpush2.bf16.msra.mxu0 0
    %228 = vmatprep.subr.bf16.mxu0 0
    %229 = vmatpush2.bf16.msra.mxu0 0
    %230 = vmatprep.subr.bf16.mxu0 0
    %231 = vmatpush2.bf16.msra.mxu0 0
    %232 = vmatprep.mubr.bf16.mxu0 0
    %233 = vmatmul.mubr.bf16.gmra.mxu0 %v135
    %v234 = vpop.f32.mrf.mxu0
    %v235 = vadd.f32 0.0, %v234
    %v236 = vpop.f32.mrf.mxu0
    %v237 = vpop.f32.mrf.mxu0
    %v238 = vpop.f32.mrf.mxu0
    %239 = vdwg.mxu0
    %v240 = vmax.f32 %v235, 0.0
    %v241 = vpack.c.bf16 %v240, %v240
    %s242 = scalar_lea.vmem [#allocation7], 64
    %v243 = vld [vmem:[%s242] sm:$0xf]
    %v244 = vld [vmem:[%s242 + $0x4] sm:$0xf]
    %v245 = vld [vmem:[%s242 + $0x8] sm:$0xf]
    %v246 = vld [vmem:[%s242 + $0xc] sm:$0xf]
    %v247 = vld [vmem:[%s242 + $0x10] sm:$0xf]
    %v248 = vld [vmem:[%s242 + $0x14] sm:$0xf]
    %v249 = vld [vmem:[%s242 + $0x18] sm:$0xf]
    %v250 = vld [vmem:[%s242 + $0x1c] sm:$0xf]
    %v251 = vld [vmem:[%s242 + $0x20] sm:$0xf]
    %v252 = vld [vmem:[%s242 + $0x24] sm:$0xf]
    %v253 = vld [vmem:[%s242 + $0x28] sm:$0xf]
    %v254 = vld [vmem:[%s242 + $0x2c] sm:$0xf]
    %v255 = vld [vmem:[%s242 + $0x30] sm:$0xf]
    %v256 = vld [vmem:[%s242 + $0x34] sm:$0xf]
    %v257 = vld [vmem:[%s242 + $0x38] sm:$0xf]
    %v258 = vld [vmem:[%s242 + $0x3c] sm:$0xf]
    %v275 = vunpack.c.l.b16 %v243
    %v276 = vunpack.c.l.b16 %v244
    %v277 = vunpack.c.l.b16 %v245
    %v278 = vunpack.c.l.b16 %v246
    %v279 = vunpack.c.l.b16 %v247
    %v280 = vunpack.c.l.b16 %v248
    %v281 = vunpack.c.l.b16 %v249
    %v282 = vunpack.c.l.b16 %v250
    %v283 = vunpack.c.l.b16 %v251
    %v284 = vunpack.c.l.b16 %v252
    %v285 = vunpack.c.l.b16 %v253
    %v286 = vunpack.c.l.b16 %v254
    %v287 = vunpack.c.l.b16 %v255
    %v288 = vunpack.c.l.b16 %v256
    %v289 = vunpack.c.l.b16 %v257
    %v290 = vunpack.c.l.b16 %v258
    %v291 = vpack.c.b16 %v276, %v275
    %v292 = vpack.c.b16 %v278, %v277
    %v293 = vpack.c.b16 %v280, %v279
    %v294 = vpack.c.b16 %v282, %v281
    %v295 = vpack.c.b16 %v284, %v283
    %v296 = vpack.c.b16 %v286, %v285
    %v297 = vpack.c.b16 %v288, %v287
    %v298 = vpack.c.b16 %v290, %v289
    %307 = vmatprep.subr.bf16.mxu0 0
    %308 = vmatpush1.bf16.msra.mxu0 %v298
    %309 = vmatprep.subr.bf16.mxu0 0
    %310 = vmatpush1.bf16.msra.mxu0 %v297
    %311 = vmatprep.subr.bf16.mxu0 0
    %312 = vmatpush1.bf16.msra.mxu0 %v296
    %313 = vmatprep.subr.bf16.mxu0 0
    %314 = vmatpush1.bf16.msra.mxu0 %v295
    %315 = vmatprep.subr.bf16.mxu0 0
    %316 = vmatpush1.bf16.msra.mxu0 %v294
    %317 = vmatprep.subr.bf16.mxu0 0
    %318 = vmatpush1.bf16.msra.mxu0 %v293
    %319 = vmatprep.subr.bf16.mxu0 0
    %320 = vmatpush1.bf16.msra.mxu0 %v292
    %321 = vmatprep.subr.bf16.mxu0 0
    %322 = vmatpush1.bf16.msra.mxu0 %v291
    %323 = vmatprep.subr.bf16.mxu0 0
    %324 = vmatpush2.bf16.msra.mxu0 0
    %325 = vmatprep.subr.bf16.mxu0 0
    %326 = vmatpush2.bf16.msra.mxu0 0
    %327 = vmatprep.subr.bf16.mxu0 0
    %328 = vmatpush2.bf16.msra.mxu0 0
    %329 = vmatprep.subr.bf16.mxu0 0
    %330 = vmatpush2.bf16.msra.mxu0 0
    %331 = vmatprep.subr.bf16.mxu0 0
    %332 = vmatpush2.bf16.msra.mxu0 0
    %333 = vmatprep.subr.bf16.mxu0 0
    %334 = vmatpush2.bf16.msra.mxu0 0
    %335 = vmatprep.subr.bf16.mxu0 0
    %336 = vmatpush2.bf16.msra.mxu0 0
    %337 = vmatprep.subr.bf16.mxu0 0
    %338 = vmatpush2.bf16.msra.mxu0 0
    %339 = vmatprep.mubr.bf16.mxu0 0
    %340 = vmatmul.mubr.bf16.gmra.mxu0 %v241
    %v341 = vpop.f32.mrf.mxu0
    %v342 = vadd.f32 0.0, %v341
    %v343 = vpop.f32.mrf.mxu0
    %v344 = vpop.f32.mrf.mxu0
    %v345 = vpop.f32.mrf.mxu0
    %346 = vdwg.mxu0
    %v347 = vmax.f32 %v342, 0.0
    %v348 = vpack.c.bf16 %v347, %v347
    %v349 = vld [vmem:[#allocation8] sm:$0xf]
    %v350 = vld [vmem:[#allocation8 + $0x4] sm:$0xf]
    %v351 = vld [vmem:[#allocation8 + $0x8] sm:$0xf]
    %v352 = vld [vmem:[#allocation8 + $0xc] sm:$0xf]
    %v353 = vld [vmem:[#allocation8 + $0x10] sm:$0xf]
    %v354 = vld [vmem:[#allocation8 + $0x14] sm:$0xf]
    %v355 = vld [vmem:[#allocation8 + $0x18] sm:$0xf]
    %v356 = vld [vmem:[#allocation8 + $0x1c] sm:$0xf]
    %v357 = vld [vmem:[#allocation8 + $0x20] sm:$0xf]
    %v358 = vld [vmem:[#allocation8 + $0x24] sm:$0xf]
    %v359 = vld [vmem:[#allocation8 + $0x28] sm:$0xf]
    %v360 = vld [vmem:[#allocation8 + $0x2c] sm:$0xf]
    %v361 = vld [vmem:[#allocation8 + $0x30] sm:$0xf]
    %v362 = vld [vmem:[#allocation8 + $0x34] sm:$0xf]
    %v363 = vld [vmem:[#allocation8 + $0x38] sm:$0xf]
    %v364 = vld [vmem:[#allocation8 + $0x3c] sm:$0xf]
    %v381 = vunpack.c.l.b16 %v349
    %v382 = vunpack.c.l.b16 %v350
    %v383 = vunpack.c.l.b16 %v351
    %v384 = vunpack.c.l.b16 %v352
    %v385 = vunpack.c.l.b16 %v353
    %v386 = vunpack.c.l.b16 %v354
    %v387 = vunpack.c.l.b16 %v355
    %v388 = vunpack.c.l.b16 %v356
    %v389 = vunpack.c.l.b16 %v357
    %v390 = vunpack.c.l.b16 %v358
    %v391 = vunpack.c.l.b16 %v359
    %v392 = vunpack.c.l.b16 %v360
    %v393 = vunpack.c.l.b16 %v361
    %v394 = vunpack.c.l.b16 %v362
    %v395 = vunpack.c.l.b16 %v363
    %v396 = vunpack.c.l.b16 %v364
    %v397 = vpack.c.b16 %v382, %v381
    %v398 = vpack.c.b16 %v384, %v383
    %v399 = vpack.c.b16 %v386, %v385
    %v400 = vpack.c.b16 %v388, %v387
    %v401 = vpack.c.b16 %v390, %v389
    %v402 = vpack.c.b16 %v392, %v391
    %v403 = vpack.c.b16 %v394, %v393
    %v404 = vpack.c.b16 %v396, %v395
    %413 = vmatprep.subr.bf16.mxu0 0
    %414 = vmatpush1.bf16.msra.mxu0 %v404
    %415 = vmatprep.subr.bf16.mxu0 0
    %416 = vmatpush1.bf16.msra.mxu0 %v403
    %417 = vmatprep.subr.bf16.mxu0 0
    %418 = vmatpush1.bf16.msra.mxu0 %v402
    %419 = vmatprep.subr.bf16.mxu0 0
    %420 = vmatpush1.bf16.msra.mxu0 %v401
    %421 = vmatprep.subr.bf16.mxu0 0
    %422 = vmatpush1.bf16.msra.mxu0 %v400
    %423 = vmatprep.subr.bf16.mxu0 0
    %424 = vmatpush1.bf16.msra.mxu0 %v399
    %425 = vmatprep.subr.bf16.mxu0 0
    %426 = vmatpush1.bf16.msra.mxu0 %v398
    %427 = vmatprep.subr.bf16.mxu0 0
    %428 = vmatpush1.bf16.msra.mxu0 %v397
    %429 = vmatprep.subr.bf16.mxu0 0
    %430 = vmatpush2.bf16.msra.mxu0 0
    %431 = vmatprep.subr.bf16.mxu0 0
    %432 = vmatpush2.bf16.msra.mxu0 0
    %433 = vmatprep.subr.bf16.mxu0 0
    %434 = vmatpush2.bf16.msra.mxu0 0
    %435 = vmatprep.subr.bf16.mxu0 0
    %436 = vmatpush2.bf16.msra.mxu0 0
    %437 = vmatprep.subr.bf16.mxu0 0
    %438 = vmatpush2.bf16.msra.mxu0 0
    %439 = vmatprep.subr.bf16.mxu0 0
    %440 = vmatpush2.bf16.msra.mxu0 0
    %441 = vmatprep.subr.bf16.mxu0 0
    %442 = vmatpush2.bf16.msra.mxu0 0
    %443 = vmatprep.subr.bf16.mxu0 0
    %444 = vmatpush2.bf16.msra.mxu0 0
    %445 = vmatprep.mubr.bf16.mxu0 0
    %446 = vmatmul.mubr.bf16.gmra.mxu0 %v348
    %v447 = vpop.f32.mrf.mxu0
    %v448 = vadd.f32 0.0, %v447
    %v449 = vpop.f32.mrf.mxu0
    %v450 = vpop.f32.mrf.mxu0
    %v451 = vpop.f32.mrf.mxu0
    %452 = vdwg.mxu0
    %453 = vst [vmem:[#allocation10] sm:$0xff] %v448
    // Predicated region
    $region34: #{tpu_custom_call.1} parent=1 // pred_check
      _
    $region35: #{tpu_custom_call.1} parent=1 // pred_check_branch
      %455 = sbr.rel (0) target = $region37
    $region36: #{tpu_custom_call.1} parent=1 // pred_region
      %s457 = ssub.s32 128, 128
      %458 = vsyncadd [#allocation4], %s457
      %s460 = sshll.u32 [#allocation10], 4
      %s461 = int_to_ptr.vmem [resolvable:$true] %s460
      %463 = dma.vmem_to_hbm [thread:$0]  %s461, 128, %s4, [#allocation4]
    $region37: #{tpu_custom_call.1} parent=1 // pred_fallthru
      _
    // Predicated region
    $region38: #{tpu_custom_call.1} parent=1 // pred_check
      _
    $region39: #{tpu_custom_call.1} parent=1 // pred_check_branch
      %465 = sbr.rel (0) target = $region41
    $region40: #{tpu_custom_call.1} parent=1 // pred_region
      %466 = dma.done [#allocation4], 128
    $region41: #{tpu_custom_call.1} parent=1 // pred_fallthru
      _
    %467 = vsyncpa [#allocation3], 1
    %468 = vsyncpa [#allocation6], 1
    %469 = vsyncpa [#allocation9], 1
    %470 = vsyncpa [#allocation4], 1

</llo_original>
